<compile_context>
chip_gen: v5e
topology: v5e:2x2
jax: 0.10.0
libtpu: 0.0.40
codegen_flags: <defaults>
</compile_context>

<pallas_src>
import functools

import jax
import jax.numpy as jnp
from jax.experimental import pallas as pl
from jax.experimental.pallas import tpu as pltpu

_SUBLANE_BF16 = 16   # bf16 sublane packing: keep batch tiles a multiple of this


def _round_up(x, m):
    return ((x + m - 1) // m) * m


def _supports_single_buffering():
    """Probe whether this JAX exposes pl.Buffered + BlockSpec(pipeline_mode=...)."""
    if not hasattr(pl, "Buffered"):
        return False
    try:
        pl.BlockSpec((8, 128), lambda i: (0, 0), pipeline_mode=pl.Buffered(1))
        return True
    except Exception:
        return False


_SINGLE_BUFFER_WEIGHTS = _supports_single_buffering()


def _rnd_kernel(n_layers, x_ref, *refs):
    """refs = (Wp0, bp0, ..., Wp_{n-1}, bp_{n-1},
               Wt0, bt0, ..., Wt_{n-1}, bt_{n-1},
               pred_out_ref, tgt_out_ref).

    Both MLP branches run on the same VMEM obs tile: bf16 MXU dots with f32
    accumulation, f32 bias + ReLU on the VPU, bf16 stores (no zero padding).
    """
    pred_out_ref, tgt_out_ref = refs[-2], refs[-1]
    param_refs = refs[:-2]

    x = x_ref[...]                          # (tb, obs_dim) bf16

    def run_branch(params):
        h = x
        acc = None
        for i in range(n_layers):
            w = params[2 * i][...]          # (in, out) bf16, VMEM-resident
            b = params[2 * i + 1][...]      # (1, out)  f32
            acc = jnp.dot(h, w, preferred_element_type=jnp.float32) + b
            acc = jnp.maximum(acc, 0.0)     # ReLU after every Linear (incl. last)
            if i != n_layers - 1:
                h = acc.astype(jnp.bfloat16)   # bf16 only where it feeds a dot
        return acc

    pred_out_ref[...] = run_branch(param_refs[:2 * n_layers]).astype(pred_out_ref.dtype)
    tgt_out_ref[...] = run_branch(param_refs[2 * n_layers:]).astype(tgt_out_ref.dtype)


def init_fc_encoder_params(key, obs_shape, hidden_size_list):
    """Deterministic synthetic init matching torch.nn.Linear default init.

    W stored as (in, out) (transpose of torch's (out, in)), bias as (1, out),
    values uniform(-1/sqrt(fan_in), 1/sqrt(fan_in)).
    """
    dims = [obs_shape] + list(hidden_size_list)
    params = []
    for i in range(len(dims) - 1):
        fan_in, fan_out = dims[i], dims[i + 1]
        key, kw, kb = jax.random.split(key, 3)
        bound = 1.0 / jnp.sqrt(jnp.float32(fan_in))
        w = jax.random.uniform(kw, (fan_in, fan_out), jnp.float32, -bound, bound)
        b = jax.random.uniform(kb, (1, fan_out), jnp.float32, -bound, bound)
        params.append((w, b))
    return params


def prepare_rnd_params(predictor_params, target_params):
    """One-time prep, call OUTSIDE the per-step hot path (review item).

    Casts weights to bf16 for the MXU, keeps biases f32, and flattens to
    (Wp0, bp0, ..., Wt0, bt0, ...).  No block-diag fusion -> no weight blowup.
    The target is frozen; re-run only when the predictor is updated.
    """
    assert len(predictor_params) == len(target_params)
    flat = []
    for branch in (predictor_params, target_params):
        for w, b in branch:
            flat.append(jnp.asarray(w, jnp.bfloat16))
            flat.append(jnp.asarray(b, jnp.float32))
    return tuple(flat)


def _choose_batch_tile(batch, batch_tile):
    """Large tiles for HBM roofline, but >= 2 grid steps whenever possible so
    the v7x megacore actually splits the batch across both TensorCores."""
    cap = max(_SUBLANE_BF16, _round_up(batch_tile, _SUBLANE_BF16))
    half = _round_up(max(1, -(-batch // 2)), _SUBLANE_BF16)
    tb = min(cap, half)
    batch_p = _round_up(batch, tb)
    return tb, batch_p


def _const_spec(shape):
    """BlockSpec for parameters: constant block index (VMEM-resident across the
    batch grid); single-buffered when supported -- double-buffering a block
    whose index never changes just wastes VMEM (matters on v7x's 64 MiB)."""
    if _SINGLE_BUFFER_WEIGHTS:
        return pl.BlockSpec(shape, lambda i: (0, 0), pipeline_mode=pl.Buffered(1))
    return pl.BlockSpec(shape, lambda i: (0, 0))


@functools.partial(jax.jit, static_argnames=("batch_tile",))
def rnd_network_forward(obs, prepared_params, *, batch_tile=512):
    """RndNetwork.forward: returns (predict_feature, target_feature) as f32."""
    n_layers = len(prepared_params) // 4
    feat_dim = prepared_params[2 * n_layers - 2].shape[1]   # last predictor W out-dim

    batch, obs_dim = obs.shape
    tb, batch_p = _choose_batch_tile(batch, batch_tile)

    # bf16 obs (halves the obs read per tile) + pad batch to a tile multiple.
    # Padded rows are zeros and get sliced off below (row-independent MLP).
    obs_bf16 = obs.astype(jnp.bfloat16)
    if batch_p != batch:
        obs_bf16 = jnp.pad(obs_bf16, ((0, batch_p - batch), (0, 0)))

    in_specs = [pl.BlockSpec((tb, obs_dim), lambda i: (i, 0))]
    in_specs += [_const_spec(a.shape) for a in prepared_params]
    out_specs = [pl.BlockSpec((tb, feat_dim), lambda i: (i, 0)),
                 pl.BlockSpec((tb, feat_dim), lambda i: (i, 0))]
    out_shape = (jax.ShapeDtypeStruct((batch_p, feat_dim), jnp.bfloat16),
                 jax.ShapeDtypeStruct((batch_p, feat_dim), jnp.bfloat16))

    pred, tgt = pl.pallas_call(
        functools.partial(_rnd_kernel, n_layers),
        out_shape=out_shape,
        grid=(batch_p // tb,),
        in_specs=in_specs,
        out_specs=out_specs,
        compiler_params=pltpu.CompilerParams(
            dimension_semantics=("parallel",)),   # batch tiles across the 2 TCs on v7x
    )(obs_bf16, *prepared_params)

    # Slice off pad rows; upcast to f32 (fuses with downstream consumers).
    predict_feature = pred[:batch].astype(jnp.float32)
    target_feature = tgt[:batch].astype(jnp.float32)
    return predict_feature, target_feature


def _reference_forward_bf16(obs, params):
    """Pure-JAX reference with the same bf16-in / f32-accumulate / bf16-store math."""
    h = obs.astype(jnp.bfloat16)
    for w, b in params:
        acc = jnp.dot(h, w.astype(jnp.bfloat16),
                      preferred_element_type=jnp.float32) + b
        acc = jnp.maximum(acc, 0.0)
        h = acc.astype(jnp.bfloat16)
    return h.astype(jnp.float32)


def _reference_forward_f32(obs, params):
    h = obs
    for w, b in params:
        h = jnp.maximum(h @ w + b, 0.0)
    return h


if __name__ == "__main__":
    batch = 50                 # deliberately not a tile multiple: exercises pad + slice
    obs_shape = 16
    hidden_size_list = [32, 32]

    key = jax.random.PRNGKey(0)
    k_obs, k_pred, k_tgt = jax.random.split(key, 3)

    obs = jax.random.normal(k_obs, (batch, obs_shape), jnp.float32)
    predictor_params = init_fc_encoder_params(k_pred, obs_shape, hidden_size_list)
    target_params = init_fc_encoder_params(k_tgt, obs_shape, hidden_size_list)

    # One-time parameter prep, hoisted out of the per-step forward (review item).
    prepared = prepare_rnd_params(predictor_params, target_params)

    # Default batch_tile=512; the tile chooser gives tb=32 -> grid=(2,) here, so
    # both v7x TensorCores get a batch slice even at this small demo batch.
    predict_feature, target_feature = rnd_network_forward(obs, prepared)
    jax.block_until_ready((predict_feature, target_feature))

    assert predict_feature.shape == (batch, hidden_size_list[-1])
    assert target_feature.shape == (batch, hidden_size_list[-1])

    # Tight check vs a pure-JAX reference using the same bf16/f32/bf16 math.
    ref_pred = _reference_forward_bf16(obs, predictor_params)
    ref_tgt = _reference_forward_bf16(obs, target_params)
    assert jnp.allclose(predict_feature, ref_pred, atol=1e-2, rtol=1e-2)
    assert jnp.allclose(target_feature, ref_tgt, atol=1e-2, rtol=1e-2)

    # Loose check vs exact f32 math (bf16 MXU inputs + bf16 store: ~1% error).
    ref_pred_f32 = _reference_forward_f32(obs, predictor_params)
    ref_tgt_f32 = _reference_forward_f32(obs, target_params)
    assert jnp.allclose(predict_feature, ref_pred_f32, atol=1e-1, rtol=1e-1)
    assert jnp.allclose(target_feature, ref_tgt_f32, atol=1e-1, rtol=1e-1)

    print("KERNEL_OK")
</pallas_src>

<mosaic_0001>
module attributes {stable_mosaic.version = 11 : i64} {
  func.func @_rnd_kernel(%arg0: i32, %arg1: memref<32x16xbf16, #tpu.memory_space<vmem>>, %arg2: memref<16x32xbf16, #tpu.memory_space<vmem>>, %arg3: memref<1x32xf32, #tpu.memory_space<vmem>>, %arg4: memref<32x32xbf16, #tpu.memory_space<vmem>>, %arg5: memref<1x32xf32, #tpu.memory_space<vmem>>, %arg6: memref<16x32xbf16, #tpu.memory_space<vmem>>, %arg7: memref<1x32xf32, #tpu.memory_space<vmem>>, %arg8: memref<32x32xbf16, #tpu.memory_space<vmem>>, %arg9: memref<1x32xf32, #tpu.memory_space<vmem>>, %arg10: memref<32x32xbf16, #tpu.memory_space<vmem>>, %arg11: memref<32x32xbf16, #tpu.memory_space<vmem>>) attributes {dimension_semantics = [#tpu.dimension_semantics<parallel>], iteration_bounds = array<i64: 2>, scalar_prefetch = 0 : i64, scratch_operands = 0 : i64, tpu.core_type = #tpu.core_type<tc>, window_params = [{transform_indices = @transform_0, window_bounds = array<i64: 32, 16>}, {pipeline_mode = #tpu.pipeline_mode<synchronous>, transform_indices = @transform_1, window_bounds = array<i64: 16, 32>}, {pipeline_mode = #tpu.pipeline_mode<synchronous>, transform_indices = @transform_2, window_bounds = array<i64: 1, 32>}, {pipeline_mode = #tpu.pipeline_mode<synchronous>, transform_indices = @transform_3, window_bounds = array<i64: 32, 32>}, {pipeline_mode = #tpu.pipeline_mode<synchronous>, transform_indices = @transform_4, window_bounds = array<i64: 1, 32>}, {pipeline_mode = #tpu.pipeline_mode<synchronous>, transform_indices = @transform_5, window_bounds = array<i64: 16, 32>}, {pipeline_mode = #tpu.pipeline_mode<synchronous>, transform_indices = @transform_6, window_bounds = array<i64: 1, 32>}, {pipeline_mode = #tpu.pipeline_mode<synchronous>, transform_indices = @transform_7, window_bounds = array<i64: 32, 32>}, {pipeline_mode = #tpu.pipeline_mode<synchronous>, transform_indices = @transform_8, window_bounds = array<i64: 1, 32>}, {transform_indices = @transform_9, window_bounds = array<i64: 32, 32>}, {transform_indices = @transform_10, window_bounds = array<i64: 32, 32>}]} {
    %c0 = arith.constant 0 : index
    %c0_0 = arith.constant 0 : index
    %0 = vector.load %arg1[%c0, %c0_0] : memref<32x16xbf16, #tpu.memory_space<vmem>>, vector<32x16xbf16>
    %c0_1 = arith.constant 0 : index
    %c0_2 = arith.constant 0 : index
    %1 = vector.load %arg2[%c0_1, %c0_2] : memref<16x32xbf16, #tpu.memory_space<vmem>>, vector<16x32xbf16>
    %c0_3 = arith.constant 0 : index
    %c0_4 = arith.constant 0 : index
    %2 = vector.load %arg3[%c0_3, %c0_4] : memref<1x32xf32, #tpu.memory_space<vmem>>, vector<1x32xf32>
    %cst = arith.constant dense<0.000000e+00> : vector<32x32xf32>
    %3 = tpu.matmul %0, %1, %cst {dimension_numbers = #tpu.dot_dimension_numbers<[1], [0], [0], [1], [0, 0, 1, 1], [], []>} : vector<32x16xbf16>, vector<16x32xbf16>, vector<32x32xf32> -> vector<32x32xf32>
    %4 = vector.broadcast %2 : vector<1x32xf32> to vector<32x32xf32>
    %5 = arith.addf %3, %4 : vector<32x32xf32>
    %cst_5 = arith.constant 0.000000e+00 : f32
    %6 = vector.broadcast %cst_5 : f32 to vector<32x32xf32>
    %7 = arith.maximumf %5, %6 : vector<32x32xf32>
    %8 = arith.truncf %7 : vector<32x32xf32> to vector<32x32xbf16>
    %c0_6 = arith.constant 0 : index
    %c0_7 = arith.constant 0 : index
    %9 = vector.load %arg4[%c0_6, %c0_7] : memref<32x32xbf16, #tpu.memory_space<vmem>>, vector<32x32xbf16>
    %c0_8 = arith.constant 0 : index
    %c0_9 = arith.constant 0 : index
    %10 = vector.load %arg5[%c0_8, %c0_9] : memref<1x32xf32, #tpu.memory_space<vmem>>, vector<1x32xf32>
    %cst_10 = arith.constant dense<0.000000e+00> : vector<32x32xf32>
    %11 = tpu.matmul %8, %9, %cst_10 {dimension_numbers = #tpu.dot_dimension_numbers<[1], [0], [0], [1], [0, 0, 1, 1], [], []>} : vector<32x32xbf16>, vector<32x32xbf16>, vector<32x32xf32> -> vector<32x32xf32>
    %12 = vector.broadcast %10 : vector<1x32xf32> to vector<32x32xf32>
    %13 = arith.addf %11, %12 : vector<32x32xf32>
    %cst_11 = arith.constant 0.000000e+00 : f32
    %14 = vector.broadcast %cst_11 : f32 to vector<32x32xf32>
    %15 = arith.maximumf %13, %14 : vector<32x32xf32>
    %16 = arith.truncf %15 : vector<32x32xf32> to vector<32x32xbf16>
    %c0_12 = arith.constant 0 : index
    %c0_13 = arith.constant 0 : index
    %17 = vector.load %arg10[%c0_12, %c0_13] : memref<32x32xbf16, #tpu.memory_space<vmem>>, vector<32x32xbf16>
    tpu.vector_store %arg10[%c0_12, %c0_13], %16 {strides = array<i32>} : memref<32x32xbf16, #tpu.memory_space<vmem>>, vector<32x32xbf16>,
    %c0_14 = arith.constant 0 : index
    %c0_15 = arith.constant 0 : index
    %18 = vector.load %arg6[%c0_14, %c0_15] : memref<16x32xbf16, #tpu.memory_space<vmem>>, vector<16x32xbf16>
    %c0_16 = arith.constant 0 : index
    %c0_17 = arith.constant 0 : index
    %19 = vector.load %arg7[%c0_16, %c0_17] : memref<1x32xf32, #tpu.memory_space<vmem>>, vector<1x32xf32>
    %cst_18 = arith.constant dense<0.000000e+00> : vector<32x32xf32>
    %20 = tpu.matmul %0, %18, %cst_18 {dimension_numbers = #tpu.dot_dimension_numbers<[1], [0], [0], [1], [0, 0, 1, 1], [], []>} : vector<32x16xbf16>, vector<16x32xbf16>, vector<32x32xf32> -> vector<32x32xf32>
    %21 = vector.broadcast %19 : vector<1x32xf32> to vector<32x32xf32>
    %22 = arith.addf %20, %21 : vector<32x32xf32>
    %cst_19 = arith.constant 0.000000e+00 : f32
    %23 = vector.broadcast %cst_19 : f32 to vector<32x32xf32>
    %24 = arith.maximumf %22, %23 : vector<32x32xf32>
    %25 = arith.truncf %24 : vector<32x32xf32> to vector<32x32xbf16>
    %c0_20 = arith.constant 0 : index
    %c0_21 = arith.constant 0 : index
    %26 = vector.load %arg8[%c0_20, %c0_21] : memref<32x32xbf16, #tpu.memory_space<vmem>>, vector<32x32xbf16>
    %c0_22 = arith.constant 0 : index
    %c0_23 = arith.constant 0 : index
    %27 = vector.load %arg9[%c0_22, %c0_23] : memref<1x32xf32, #tpu.memory_space<vmem>>, vector<1x32xf32>
    %cst_24 = arith.constant dense<0.000000e+00> : vector<32x32xf32>
    %28 = tpu.matmul %25, %26, %cst_24 {dimension_numbers = #tpu.dot_dimension_numbers<[1], [0], [0], [1], [0, 0, 1, 1], [], []>} : vector<32x32xbf16>, vector<32x32xbf16>, vector<32x32xf32> -> vector<32x32xf32>
    %29 = vector.broadcast %27 : vector<1x32xf32> to vector<32x32xf32>
    %30 = arith.addf %28, %29 : vector<32x32xf32>
    %cst_25 = arith.constant 0.000000e+00 : f32
    %31 = vector.broadcast %cst_25 : f32 to vector<32x32xf32>
    %32 = arith.maximumf %30, %31 : vector<32x32xf32>
    %33 = arith.truncf %32 : vector<32x32xf32> to vector<32x32xbf16>
    %c0_26 = arith.constant 0 : index
    %c0_27 = arith.constant 0 : index
    %34 = vector.load %arg11[%c0_26, %c0_27] : memref<32x32xbf16, #tpu.memory_space<vmem>>, vector<32x32xbf16>
    tpu.vector_store %arg11[%c0_26, %c0_27], %33 {strides = array<i32>} : memref<32x32xbf16, #tpu.memory_space<vmem>>, vector<32x32xbf16>,
    return
  }
  func.func @transform_0(%arg0: i32) -> (i32, i32) {
    %c0_i32 = arith.constant 0 : i32
    %c0_i32_0 = arith.constant 0 : i32
    return %arg0, %c0_i32 : i32, i32
  }
  func.func @transform_1(%arg0: i32) -> (i32, i32) {
    %c0_i32 = arith.constant 0 : i32
    %c0_i32_0 = arith.constant 0 : i32
    %c0_i32_1 = arith.constant 0 : i32
    return %c0_i32, %c0_i32_0 : i32, i32
  }
  func.func @transform_2(%arg0: i32) -> (i32, i32) {
    %c0_i32 = arith.constant 0 : i32
    %c0_i32_0 = arith.constant 0 : i32
    %c0_i32_1 = arith.constant 0 : i32
    return %c0_i32, %c0_i32_0 : i32, i32
  }
  func.func @transform_3(%arg0: i32) -> (i32, i32) {
    %c0_i32 = arith.constant 0 : i32
    %c0_i32_0 = arith.constant 0 : i32
    %c0_i32_1 = arith.constant 0 : i32
    return %c0_i32, %c0_i32_0 : i32, i32
  }
  func.func @transform_4(%arg0: i32) -> (i32, i32) {
    %c0_i32 = arith.constant 0 : i32
    %c0_i32_0 = arith.constant 0 : i32
    %c0_i32_1 = arith.constant 0 : i32
    return %c0_i32, %c0_i32_0 : i32, i32
  }
  func.func @transform_5(%arg0: i32) -> (i32, i32) {
    %c0_i32 = arith.constant 0 : i32
    %c0_i32_0 = arith.constant 0 : i32
    %c0_i32_1 = arith.constant 0 : i32
    return %c0_i32, %c0_i32_0 : i32, i32
  }
  func.func @transform_6(%arg0: i32) -> (i32, i32) {
    %c0_i32 = arith.constant 0 : i32
    %c0_i32_0 = arith.constant 0 : i32
    %c0_i32_1 = arith.constant 0 : i32
    return %c0_i32, %c0_i32_0 : i32, i32
  }
  func.func @transform_7(%arg0: i32) -> (i32, i32) {
    %c0_i32 = arith.constant 0 : i32
    %c0_i32_0 = arith.constant 0 : i32
    %c0_i32_1 = arith.constant 0 : i32
    return %c0_i32, %c0_i32_0 : i32, i32
  }
  func.func @transform_8(%arg0: i32) -> (i32, i32) {
    %c0_i32 = arith.constant 0 : i32
    %c0_i32_0 = arith.constant 0 : i32
    %c0_i32_1 = arith.constant 0 : i32
    return %c0_i32, %c0_i32_0 : i32, i32
  }
  func.func @transform_9(%arg0: i32) -> (i32, i32) {
    %c0_i32 = arith.constant 0 : i32
    %c0_i32_0 = arith.constant 0 : i32
    return %arg0, %c0_i32 : i32, i32
  }
  func.func @transform_10(%arg0: i32) -> (i32, i32) {
    %c0_i32 = arith.constant 0 : i32
    %c0_i32_0 = arith.constant 0 : i32
    return %arg0, %c0_i32 : i32, i32
  }
}

</mosaic_0001>

<llo_original>
// kernel: rnd_network_forward.1
$region0: #{rnd_network_forward.1}
  #allocation0 [shape = 'u32[]', space=smem, size = 0x4, offset = 0x4, fixed_abs, tag = 'smem constant byte address 0x4 - core index']
  #allocation1 [shape = 'u32[72,128]{1,0:T(1,128)}', space=vmem, size = 0x9000, scoped, tag = 'internal scratch']
  %s0 = inlined_call_operand.vmem [shape: bf16[64,16], index: 0, kind: input, shape index: {}]
  %s1 = inlined_call_operand.vmem [shape: bf16[16,32], index: 1, kind: input, shape index: {}]
  %s2 = inlined_call_operand.vmem [shape: f32[1,32], index: 2, kind: input, shape index: {}]
  %s3 = inlined_call_operand.vmem [shape: bf16[32,32], index: 3, kind: input, shape index: {}]
  %s4 = inlined_call_operand.vmem [shape: f32[1,32], index: 4, kind: input, shape index: {}]
  %s5 = inlined_call_operand.vmem [shape: bf16[16,32], index: 5, kind: input, shape index: {}]
  %s6 = inlined_call_operand.vmem [shape: f32[1,32], index: 6, kind: input, shape index: {}]
  %s7 = inlined_call_operand.vmem [shape: bf16[32,32], index: 7, kind: input, shape index: {}]
  %s8 = inlined_call_operand.vmem [shape: f32[1,32], index: 8, kind: input, shape index: {}]
  %s9 = inlined_call_operand.vmem [shape: bf16[64,32], index: 9, kind: output, shape index: {0}]
  %s10 = inlined_call_operand.vmem [shape: bf16[64,32], index: 10, kind: output, shape index: {1}]
  %11 = xla_tuple %s9, %s10
  %s12 = sld [smem:[#allocation0]]
  $region77: #{rnd_network_forward.1} parent=0
    _
  %s14 = ssub.s32 1, %s12
  %s15 = scalar_select 0, %s14, %s12
  loop: start=0, step=1, limit=4
  $region2: #{rnd_network_forward.1} parent=0 // loop_pre_header
    _
  $region3: #{rnd_network_forward.1} parent=0 // loop_header
    %s17 = sphi 0, %s21
    %p18 = scmp.ge.s32.totalorder %s17, 4
    %s27 = sphi 0, %s29
    %s30 = sphi 0, %s27
    %s31 = sphi 0, %s30
    %s47 = sphi 0, %s31
    %s51 = sphi 0, %s51
    %s53 = sphi 0, %s51
    %s54 = sphi 0, %s53
    %s68 = sphi 0, %s54
    %s72 = sphi 0, %s72
    %s74 = sphi 0, %s72
    %s75 = sphi 0, %s74
    %s89 = sphi 0, %s75
    %s93 = sphi 0, %s93
    %s95 = sphi 0, %s93
    %s96 = sphi 0, %s95
    %s110 = sphi 0, %s96
    %s114 = sphi 0, %s114
    %s116 = sphi 0, %s114
    %s117 = sphi 0, %s116
    %s131 = sphi 0, %s117
    %s135 = sphi 0, %s135
    %s137 = sphi 0, %s135
    %s138 = sphi 0, %s137
    %s152 = sphi 0, %s138
    %s156 = sphi 0, %s156
    %s158 = sphi 0, %s156
    %s159 = sphi 0, %s158
    %s173 = sphi 0, %s159
    %s177 = sphi 0, %s177
    %s179 = sphi 0, %s177
    %s180 = sphi 0, %s179
    %s194 = sphi 0, %s180
    %s198 = sphi 0, %s198
    %s200 = sphi 0, %s198
    %s201 = sphi 0, %s200
    %s215 = sphi 0, %s201
    %s221 = sphi 0, %s223
    %s224 = sphi 0, %s221
    %s225 = sphi 0, %s224
    %s241 = sphi 0, %s225
    %s247 = sphi 0, %s249
    %s250 = sphi 0, %s247
    %s251 = sphi 0, %s250
    %s267 = sphi 0, %s251
  $region4: #{rnd_network_forward.1} parent=0 // loop_header_branch
    %20 = sbr.rel (%p18) target = $region8
  $region5: #{rnd_network_forward.1} parent=0 // loop_body
    %s22 = ssub.s32 %s17, 1
    %s23 = ssub.s32 %s17, 2
    %s24 = sadd.s32 %s17, 1
    %s25 = ssub.s32 %s17, %s24
    %p26 = scmp.eq.s32.totalorder %s25, 0
    %s28 = sadd.s32 %s27, 1
    %s29 = scalar_select %p26, %s27, %s28
    %p32 = pneg %p26
    %p33 = scmp.eq.s32.totalorder %s17, 1
    %p34 = por %p32, %p33
    %p35 = scmp.ne.s32.totalorder %s27, %s30
    %p36 = scmp.eq.s32.totalorder %s17, 0
    %p37 = por %p35, %p36
    %p38 = scmp.ne.s32.totalorder %s27, %s30
    %p39 = scmp.eq.s32.totalorder %s22, 1
    %p40 = por %p38, %p39
    %p41 = scmp.ne.s32.totalorder %s30, %s31
    %p42 = scmp.eq.s32.totalorder %s22, 0
    %p43 = por %p41, %p42
    %p44 = scmp.ne.s32.totalorder %s30, %s31
    %p45 = scmp.eq.s32.totalorder %s23, 1
    %p46 = por %p44, %p45
    %p48 = scmp.ne.s32.totalorder %s31, %s47
    %p49 = scmp.eq.s32.totalorder %s23, 0
    %p50 = por %p48, %p49
    %s52 = sadd.s32 %s51, 1
    %p55 = scmp.eq.s32.totalorder %s17, 1
    %p56 = scmp.ne.s32.totalorder %s51, %s53
    %p57 = scmp.eq.s32.totalorder %s17, 0
    %p58 = por %p56, %p57
    %p59 = scmp.ne.s32.totalorder %s51, %s53
    %p60 = scmp.eq.s32.totalorder %s22, 1
    %p61 = por %p59, %p60
    %p62 = scmp.ne.s32.totalorder %s53, %s54
    %p63 = scmp.eq.s32.totalorder %s22, 0
    %p64 = por %p62, %p63
    %p65 = scmp.ne.s32.totalorder %s53, %s54
    %p66 = scmp.eq.s32.totalorder %s23, 1
    %p67 = por %p65, %p66
    %p69 = scmp.ne.s32.totalorder %s54, %s68
    %p70 = scmp.eq.s32.totalorder %s23, 0
    %p71 = por %p69, %p70
    %s73 = sadd.s32 %s72, 1
    %p76 = scmp.eq.s32.totalorder %s17, 1
    %p77 = scmp.ne.s32.totalorder %s72, %s74
    %p78 = scmp.eq.s32.totalorder %s17, 0
    %p79 = por %p77, %p78
    %p80 = scmp.ne.s32.totalorder %s72, %s74
    %p81 = scmp.eq.s32.totalorder %s22, 1
    %p82 = por %p80, %p81
    %p83 = scmp.ne.s32.totalorder %s74, %s75
    %p84 = scmp.eq.s32.totalorder %s22, 0
    %p85 = por %p83, %p84
    %p86 = scmp.ne.s32.totalorder %s74, %s75
    %p87 = scmp.eq.s32.totalorder %s23, 1
    %p88 = por %p86, %p87
    %p90 = scmp.ne.s32.totalorder %s75, %s89
    %p91 = scmp.eq.s32.totalorder %s23, 0
    %p92 = por %p90, %p91
    %s94 = sadd.s32 %s93, 1
    %p97 = scmp.eq.s32.totalorder %s17, 1
    %p98 = scmp.ne.s32.totalorder %s93, %s95
    %p99 = scmp.eq.s32.totalorder %s17, 0
    %p100 = por %p98, %p99
    %p101 = scmp.ne.s32.totalorder %s93, %s95
    %p102 = scmp.eq.s32.totalorder %s22, 1
    %p103 = por %p101, %p102
    %p104 = scmp.ne.s32.totalorder %s95, %s96
    %p105 = scmp.eq.s32.totalorder %s22, 0
    %p106 = por %p104, %p105
    %p107 = scmp.ne.s32.totalorder %s95, %s96
    %p108 = scmp.eq.s32.totalorder %s23, 1
    %p109 = por %p107, %p108
    %p111 = scmp.ne.s32.totalorder %s96, %s110
    %p112 = scmp.eq.s32.totalorder %s23, 0
    %p113 = por %p111, %p112
    %s115 = sadd.s32 %s114, 1
    %p118 = scmp.eq.s32.totalorder %s17, 1
    %p119 = scmp.ne.s32.totalorder %s114, %s116
    %p120 = scmp.eq.s32.totalorder %s17, 0
    %p121 = por %p119, %p120
    %p122 = scmp.ne.s32.totalorder %s114, %s116
    %p123 = scmp.eq.s32.totalorder %s22, 1
    %p124 = por %p122, %p123
    %p125 = scmp.ne.s32.totalorder %s116, %s117
    %p126 = scmp.eq.s32.totalorder %s22, 0
    %p127 = por %p125, %p126
    %p128 = scmp.ne.s32.totalorder %s116, %s117
    %p129 = scmp.eq.s32.totalorder %s23, 1
    %p130 = por %p128, %p129
    %p132 = scmp.ne.s32.totalorder %s117, %s131
    %p133 = scmp.eq.s32.totalorder %s23, 0
    %p134 = por %p132, %p133
    %s136 = sadd.s32 %s135, 1
    %p139 = scmp.eq.s32.totalorder %s17, 1
    %p140 = scmp.ne.s32.totalorder %s135, %s137
    %p141 = scmp.eq.s32.totalorder %s17, 0
    %p142 = por %p140, %p141
    %p143 = scmp.ne.s32.totalorder %s135, %s137
    %p144 = scmp.eq.s32.totalorder %s22, 1
    %p145 = por %p143, %p144
    %p146 = scmp.ne.s32.totalorder %s137, %s138
    %p147 = scmp.eq.s32.totalorder %s22, 0
    %p148 = por %p146, %p147
    %p149 = scmp.ne.s32.totalorder %s137, %s138
    %p150 = scmp.eq.s32.totalorder %s23, 1
    %p151 = por %p149, %p150
    %p153 = scmp.ne.s32.totalorder %s138, %s152
    %p154 = scmp.eq.s32.totalorder %s23, 0
    %p155 = por %p153, %p154
    %s157 = sadd.s32 %s156, 1
    %p160 = scmp.eq.s32.totalorder %s17, 1
    %p161 = scmp.ne.s32.totalorder %s156, %s158
    %p162 = scmp.eq.s32.totalorder %s17, 0
    %p163 = por %p161, %p162
    %p164 = scmp.ne.s32.totalorder %s156, %s158
    %p165 = scmp.eq.s32.totalorder %s22, 1
    %p166 = por %p164, %p165
    %p167 = scmp.ne.s32.totalorder %s158, %s159
    %p168 = scmp.eq.s32.totalorder %s22, 0
    %p169 = por %p167, %p168
    %p170 = scmp.ne.s32.totalorder %s158, %s159
    %p171 = scmp.eq.s32.totalorder %s23, 1
    %p172 = por %p170, %p171
    %p174 = scmp.ne.s32.totalorder %s159, %s173
    %p175 = scmp.eq.s32.totalorder %s23, 0
    %p176 = por %p174, %p175
    %s178 = sadd.s32 %s177, 1
    %p181 = scmp.eq.s32.totalorder %s17, 1
    %p182 = scmp.ne.s32.totalorder %s177, %s179
    %p183 = scmp.eq.s32.totalorder %s17, 0
    %p184 = por %p182, %p183
    %p185 = scmp.ne.s32.totalorder %s177, %s179
    %p186 = scmp.eq.s32.totalorder %s22, 1
    %p187 = por %p185, %p186
    %p188 = scmp.ne.s32.totalorder %s179, %s180
    %p189 = scmp.eq.s32.totalorder %s22, 0
    %p190 = por %p188, %p189
    %p191 = scmp.ne.s32.totalorder %s179, %s180
    %p192 = scmp.eq.s32.totalorder %s23, 1
    %p193 = por %p191, %p192
    %p195 = scmp.ne.s32.totalorder %s180, %s194
    %p196 = scmp.eq.s32.totalorder %s23, 0
    %p197 = por %p195, %p196
    %s199 = sadd.s32 %s198, 1
    %p202 = scmp.eq.s32.totalorder %s17, 1
    %p203 = scmp.ne.s32.totalorder %s198, %s200
    %p204 = scmp.eq.s32.totalorder %s17, 0
    %p205 = por %p203, %p204
    %p206 = scmp.ne.s32.totalorder %s198, %s200
    %p207 = scmp.eq.s32.totalorder %s22, 1
    %p208 = por %p206, %p207
    %p209 = scmp.ne.s32.totalorder %s200, %s201
    %p210 = scmp.eq.s32.totalorder %s22, 0
    %p211 = por %p209, %p210
    %p212 = scmp.ne.s32.totalorder %s200, %s201
    %p213 = scmp.eq.s32.totalorder %s23, 1
    %p214 = por %p212, %p213
    %p216 = scmp.ne.s32.totalorder %s201, %s215
    %p217 = scmp.eq.s32.totalorder %s23, 0
    %p218 = por %p216, %p217
    %s219 = ssub.s32 %s17, %s24
    %p220 = scmp.eq.s32.totalorder %s219, 0
    %s222 = sadd.s32 %s221, 1
    %s223 = scalar_select %p220, %s221, %s222
    %p226 = pneg %p220
    %p227 = scmp.eq.s32.totalorder %s17, 1
    %p228 = por %p226, %p227
    %p229 = scmp.ne.s32.totalorder %s221, %s224
    %p230 = scmp.eq.s32.totalorder %s17, 0
    %p231 = por %p229, %p230
    %p232 = scmp.ne.s32.totalorder %s221, %s224
    %p233 = scmp.eq.s32.totalorder %s22, 1
    %p234 = por %p232, %p233
    %p235 = scmp.ne.s32.totalorder %s224, %s225
    %p236 = scmp.eq.s32.totalorder %s22, 0
    %p237 = por %p235, %p236
    %p238 = scmp.ne.s32.totalorder %s224, %s225
    %p239 = scmp.eq.s32.totalorder %s23, 1
    %p240 = por %p238, %p239
    %p242 = scmp.ne.s32.totalorder %s225, %s241
    %p243 = scmp.eq.s32.totalorder %s23, 0
    %p244 = por %p242, %p243
    %s245 = ssub.s32 %s17, %s24
    %p246 = scmp.eq.s32.totalorder %s245, 0
    %s248 = sadd.s32 %s247, 1
    %s249 = scalar_select %p246, %s247, %s248
    %p252 = pneg %p246
    %p253 = scmp.eq.s32.totalorder %s17, 1
    %p254 = por %p252, %p253
    %p255 = scmp.ne.s32.totalorder %s247, %s250
    %p256 = scmp.eq.s32.totalorder %s17, 0
    %p257 = por %p255, %p256
    %p258 = scmp.ne.s32.totalorder %s247, %s250
    %p259 = scmp.eq.s32.totalorder %s22, 1
    %p260 = por %p258, %p259
    %p261 = scmp.ne.s32.totalorder %s250, %s251
    %p262 = scmp.eq.s32.totalorder %s22, 0
    %p263 = por %p261, %p262
    %p264 = scmp.ne.s32.totalorder %s250, %s251
    %p265 = scmp.eq.s32.totalorder %s23, 1
    %p266 = por %p264, %p265
    %p268 = scmp.ne.s32.totalorder %s251, %s267
    %p269 = scmp.eq.s32.totalorder %s23, 0
    %p270 = por %p268, %p269
    %p271 = scmp.le.s32.totalorder 1, %s17
    %p272 = scmp.lt.s32.totalorder %s17, 3
    %p273 = pnand %p271, %p272
    %p274 = pneg %p273
    // Predicated region
    $region9: #{rnd_network_forward.1} parent=5 // pred_check
      _
    $region10: #{rnd_network_forward.1} parent=5 // pred_check_branch
      %276 = sbr.rel (%p273) target = $region12
    $region11: #{rnd_network_forward.1} parent=5 // pred_region
      %s277 = ssub.s32 %s17, 1
      // Predicated region
      $region13: #{rnd_network_forward.1} parent=11 // pred_check
        %p278 = pneg %p64
      $region14: #{rnd_network_forward.1} parent=11 // pred_check_branch
        %280 = sbr.rel (%p278) target = $region16
      $region15: #{rnd_network_forward.1} parent=11 // pred_region
        _
      $region16: #{rnd_network_forward.1} parent=11 // pred_fallthru
        _
      // Predicated region
      $region17: #{rnd_network_forward.1} parent=11 // pred_check
        %p281 = pneg %p85
      $region18: #{rnd_network_forward.1} parent=11 // pred_check_branch
        %283 = sbr.rel (%p281) target = $region20
      $region19: #{rnd_network_forward.1} parent=11 // pred_region
        _
      $region20: #{rnd_network_forward.1} parent=11 // pred_fallthru
        _
      // Predicated region
      $region21: #{rnd_network_forward.1} parent=11 // pred_check
        %p284 = pneg %p106
      $region22: #{rnd_network_forward.1} parent=11 // pred_check_branch
        %286 = sbr.rel (%p284) target = $region24
      $region23: #{rnd_network_forward.1} parent=11 // pred_region
        _
      $region24: #{rnd_network_forward.1} parent=11 // pred_fallthru
        _
      // Predicated region
      $region25: #{rnd_network_forward.1} parent=11 // pred_check
        %p287 = pneg %p127
      $region26: #{rnd_network_forward.1} parent=11 // pred_check_branch
        %289 = sbr.rel (%p287) target = $region28
      $region27: #{rnd_network_forward.1} parent=11 // pred_region
        _
      $region28: #{rnd_network_forward.1} parent=11 // pred_fallthru
        _
      // Predicated region
      $region29: #{rnd_network_forward.1} parent=11 // pred_check
        %p290 = pneg %p148
      $region30: #{rnd_network_forward.1} parent=11 // pred_check_branch
        %292 = sbr.rel (%p290) target = $region32
      $region31: #{rnd_network_forward.1} parent=11 // pred_region
        _
      $region32: #{rnd_network_forward.1} parent=11 // pred_fallthru
        _
      // Predicated region
      $region33: #{rnd_network_forward.1} parent=11 // pred_check
        %p293 = pneg %p169
      $region34: #{rnd_network_forward.1} parent=11 // pred_check_branch
        %295 = sbr.rel (%p293) target = $region36
      $region35: #{rnd_network_forward.1} parent=11 // pred_region
        _
      $region36: #{rnd_network_forward.1} parent=11 // pred_fallthru
        _
      // Predicated region
      $region37: #{rnd_network_forward.1} parent=11 // pred_check
        %p296 = pneg %p190
      $region38: #{rnd_network_forward.1} parent=11 // pred_check_branch
        %298 = sbr.rel (%p296) target = $region40
      $region39: #{rnd_network_forward.1} parent=11 // pred_region
        _
      $region40: #{rnd_network_forward.1} parent=11 // pred_fallthru
        _
      // Predicated region
      $region41: #{rnd_network_forward.1} parent=11 // pred_check
        %p299 = pneg %p211
      $region42: #{rnd_network_forward.1} parent=11 // pred_check_branch
        %301 = sbr.rel (%p299) target = $region44
      $region43: #{rnd_network_forward.1} parent=11 // pred_region
        _
      $region44: #{rnd_network_forward.1} parent=11 // pred_fallthru
        _
    $region12: #{rnd_network_forward.1} parent=5 // pred_fallthru
      _
    %p302 = scmp.lt.s32.totalorder %s17, 2
    // Predicated region
    $region45: #{rnd_network_forward.1} parent=5 // pred_check
      %p303 = pneg %p302
    $region46: #{rnd_network_forward.1} parent=5 // pred_check_branch
      %305 = sbr.rel (%p303) target = $region48
    $region47: #{rnd_network_forward.1} parent=5 // pred_region
      // Predicated region
      $region49: #{rnd_network_forward.1} parent=47 // pred_check
        %p306 = pneg %p37
      $region50: #{rnd_network_forward.1} parent=47 // pred_check_branch
        %308 = sbr.rel (%p306) target = $region52
      $region51: #{rnd_network_forward.1} parent=47 // pred_region
        %s309 = smul.u32 4, %s17
        %p310 = scmp.lt.s32.totalorder %s309, 7
        %s311 = scalar_select %p310, %s309, 7
        %s312 = smul.addr %s311, 4
        %s313 = scalar_lea.vmem %s0, %s312
        %s314 = smul.u32 4, %s17
      $region52: #{rnd_network_forward.1} parent=47 // pred_fallthru
        _
    $region48: #{rnd_network_forward.1} parent=5 // pred_fallthru
      _
    %p315 = scmp.le.s32.totalorder 1, %s17
    %p316 = scmp.lt.s32.totalorder %s17, 3
    %p317 = pnand %p315, %p316
    %p318 = pneg %p317
    // Predicated region
    $region53: #{rnd_network_forward.1} parent=5 // pred_check
      _
    $region54: #{rnd_network_forward.1} parent=5 // pred_check_branch
      %320 = sbr.rel (%p317) target = $region56
    $region55: #{rnd_network_forward.1} parent=5 // pred_region
      %s321 = ssub.s32 %s17, 1
      %s322 = smul.u32 4, %s22
      %p323 = scmp.lt.s32.totalorder %s322, 7
      %s324 = scalar_select %p323, %s322, 7
      %s325 = smul.addr %s324, 4
      %s326 = scalar_lea.vmem %s0, %s325
      %p327 = pneg %p43
      %p328 = pneg %p40
      %p329 = pneg %p64
      %p330 = pneg %p61
      %p331 = pneg %p85
      %p332 = pneg %p82
      %p333 = pneg %p106
      %p334 = pneg %p103
      %p335 = pneg %p127
      %p336 = pneg %p124
      %p337 = pneg %p148
      %p338 = pneg %p145
      %p339 = pneg %p169
      %p340 = pneg %p166
      %p341 = pneg %p190
      %p342 = pneg %p187
      %p343 = pneg %p211
      %p344 = pneg %p208
      %p345 = pneg %p237
      %p346 = pneg %p234
      %s347 = smul.u32 4, %s22
      %p348 = scmp.lt.s32.totalorder %s347, 7
      %s349 = scalar_select %p348, %s347, 7
      %s350 = smul.addr %s349, 4
      %s351 = scalar_lea.vmem %s9, %s350
      %p352 = pneg %p263
      %p353 = pneg %p260
      %s354 = smul.u32 4, %s22
      %p355 = scmp.lt.s32.totalorder %s354, 7
      %s356 = scalar_select %p355, %s354, 7
      %s357 = smul.addr %s356, 4
      %s358 = scalar_lea.vmem %s10, %s357
      %s359 = smul.u32 4, %s22
      %p360 = scmp.lt.s32.totalorder %s359, 7
      %s361 = scalar_select %p360, %s359, 7
      %s362 = smul.addr %s361, 4
      %s363 = scalar_lea.vmem %s0, %s362
      %s364 = smul.u32 4, %s22
      %s365 = smul.u32 4, %s22
      %p366 = scmp.lt.s32.totalorder %s365, 7
      %s367 = scalar_select %p366, %s365, 7
      %s368 = smul.addr %s367, 4
      %s369 = scalar_lea.vmem %s9, %s368
      %s370 = smul.u32 4, %s22
      %s371 = smul.u32 4, %s22
      %p372 = scmp.lt.s32.totalorder %s371, 7
      %s373 = scalar_select %p372, %s371, 7
      %s374 = smul.addr %s373, 4
      %s375 = scalar_lea.vmem %s10, %s374
      %s376 = smul.u32 4, %s22
      %v378 = vld [vmem:[%s363] sm:$0xf]
      %v379 = vld [vmem:[%s363 + $0x4] sm:$0xf]
      %v380 = vld [vmem:[%s363 + $0x8] sm:$0xf]
      %v381 = vld [vmem:[%s363 + $0xc] sm:$0xf]
      %v382 = vld [vmem:[%s1] sm:$0xf]
      %v383 = vld [vmem:[%s1 + $0x4] sm:$0xf]
      %v384 = vld [vmem:[%s2] sm:$0x1]
      %v386 = vperm.slane %v384, 0
      %v392 = vunpack.c.l.b16 %v378
      %v393 = vunpack.c.l.b16 %v379
      %v394 = vunpack.c.l.b16 %v380
      %v395 = vunpack.c.l.b16 %v381
      %v396 = vpack.c.b16 %v393, %v392
      %v397 = vpack.c.b16 %v395, %v394
      %v400 = vunpack.c.l.b16 %v382
      %v401 = vunpack.c.l.b16 %v383
      %v402 = vpack.c.b16 %v401, %v400
      %vm404 = vcmask 130048
      %v406 = vsel %vm404, %v396, 0
      %v409 = vsel %vm404, %v397, 0
      %411 = vmatpush.bf16.msra.mxu0 0
      %412 = vmatpush.bf16.msra.mxu0 0
      %413 = vmatpush.bf16.msra.mxu0 0
      %414 = vmatpush.bf16.msra.mxu0 0
      %415 = vmatpush.bf16.msra.mxu0 0
      %416 = vmatpush.bf16.msra.mxu0 0
      %417 = vmatpush.bf16.msra.mxu0 0
      %418 = vmatpush.bf16.msra.mxu0 %v402
      %419 = vmatmul.bf16.gmra.mxu0 %v406
      %v420 = vpop.f32.mrf.mxu0
      %v421 = vadd.f32 %v386, %v420
      %v422 = vpop.f32.mrf.mxu0
      %v423 = vadd.f32 %v386, %v422
      %424 = vmatmul.bf16.gmra.mxu0 %v409
      %v425 = vpop.f32.mrf.mxu0
      %v426 = vadd.f32 %v386, %v425
      %v427 = vpop.f32.mrf.mxu0
      %v428 = vadd.f32 %v386, %v427
      %429 = vdwg.mxu0
      %v430 = vmax.f32 %v421, 0.0
      %v431 = vmax.f32 %v423, 0.0
      %v432 = vmax.f32 %v426, 0.0
      %v433 = vmax.f32 %v428, 0.0
      %v434 = vpack.c.bf16 %v431, %v430
      %v435 = vpack.c.bf16 %v433, %v432
      %v436 = vld [vmem:[%s3] sm:$0xf]
      %v437 = vld [vmem:[%s3 + $0x4] sm:$0xf]
      %v438 = vld [vmem:[%s3 + $0x8] sm:$0xf]
      %v439 = vld [vmem:[%s3 + $0xc] sm:$0xf]
      %v440 = vld [vmem:[%s4] sm:$0x1]
      %v442 = vperm.slane %v440, 0
      %v448 = vunpack.c.l.b16 %v436
      %v449 = vunpack.c.l.b16 %v437
      %v450 = vunpack.c.l.b16 %v438
      %v451 = vunpack.c.l.b16 %v439
      %v452 = vpack.c.b16 %v449, %v448
      %v453 = vpack.c.b16 %v451, %v450
      %vm456 = vcmask 261120
      %v458 = vsel %vm456, %v434, 0
      %v461 = vsel %vm456, %v435, 0
      %463 = vmatpush.bf16.msra.mxu0 0
      %464 = vmatpush.bf16.msra.mxu0 0
      %465 = vmatpush.bf16.msra.mxu0 0
      %466 = vmatpush.bf16.msra.mxu0 0
      %467 = vmatpush.bf16.msra.mxu0 0
      %468 = vmatpush.bf16.msra.mxu0 0
      %469 = vmatpush.bf16.msra.mxu0 %v453
      %470 = vmatpush.bf16.msra.mxu0 %v452
      %471 = vmatmul.bf16.gmra.mxu0 %v458
      %v472 = vpop.f32.mrf.mxu0
      %v473 = vadd.f32 %v442, %v472
      %v474 = vpop.f32.mrf.mxu0
      %v475 = vadd.f32 %v442, %v474
      %476 = vmatmul.bf16.gmra.mxu0 %v461
      %v477 = vpop.f32.mrf.mxu0
      %v478 = vadd.f32 %v442, %v477
      %v479 = vpop.f32.mrf.mxu0
      %v480 = vadd.f32 %v442, %v479
      %481 = vdwg.mxu0
      %v482 = vmax.f32 %v473, 0.0
      %v483 = vmax.f32 %v475, 0.0
      %v484 = vmax.f32 %v478, 0.0
      %v485 = vmax.f32 %v480, 0.0
      %v486 = vpack.c.bf16 %v482, %v482
      %v487 = vpack.c.bf16 %v483, %v483
      %v488 = vpack.c.bf16 %v484, %v484
      %v489 = vpack.c.bf16 %v485, %v485
      %vm490 = vcmask 257024
      %491 = vst.msk [vmem:[%s369] sm:$0xf] %vm490, %v486
      %492 = vst.msk [vmem:[%s369 + $0x4] sm:$0xf] %vm490, %v487
      %493 = vst.msk [vmem:[%s369 + $0x8] sm:$0xf] %vm490, %v488
      %494 = vst.msk [vmem:[%s369 + $0xc] sm:$0xf] %vm490, %v489
      %v495 = vld [vmem:[%s5] sm:$0xf]
      %v496 = vld [vmem:[%s5 + $0x4] sm:$0xf]
      %v497 = vld [vmem:[%s6] sm:$0x1]
      %v499 = vperm.slane %v497, 0
      %v503 = vunpack.c.l.b16 %v495
      %v504 = vunpack.c.l.b16 %v496
      %v505 = vpack.c.b16 %v504, %v503
      %507 = vmatpush.bf16.msra.mxu0 0
      %508 = vmatpush.bf16.msra.mxu0 0
      %509 = vmatpush.bf16.msra.mxu0 0
      %510 = vmatpush.bf16.msra.mxu0 0
      %511 = vmatpush.bf16.msra.mxu0 0
      %512 = vmatpush.bf16.msra.mxu0 0
      %513 = vmatpush.bf16.msra.mxu0 0
      %514 = vmatpush.bf16.msra.mxu0 %v505
      %515 = vmatmul.bf16.gmra.mxu0 %v406
      %v516 = vpop.f32.mrf.mxu0
      %v517 = vadd.f32 %v499, %v516
      %v518 = vpop.f32.mrf.mxu0
      %v519 = vadd.f32 %v499, %v518
      %520 = vmatmul.bf16.gmra.mxu0 %v409
      %v521 = vpop.f32.mrf.mxu0
      %v522 = vadd.f32 %v499, %v521
      %v523 = vpop.f32.mrf.mxu0
      %v524 = vadd.f32 %v499, %v523
      %525 = vdwg.mxu0
      %v526 = vmax.f32 %v517, 0.0
      %v527 = vmax.f32 %v519, 0.0
      %v528 = vmax.f32 %v522, 0.0
      %v529 = vmax.f32 %v524, 0.0
      %v530 = vpack.c.bf16 %v527, %v526
      %v531 = vpack.c.bf16 %v529, %v528
      %v532 = vld [vmem:[%s7] sm:$0xf]
      %v533 = vld [vmem:[%s7 + $0x4] sm:$0xf]
      %v534 = vld [vmem:[%s7 + $0x8] sm:$0xf]
      %v535 = vld [vmem:[%s7 + $0xc] sm:$0xf]
      %v536 = vld [vmem:[%s8] sm:$0x1]
      %v538 = vperm.slane %v536, 0
      %v544 = vunpack.c.l.b16 %v532
      %v545 = vunpack.c.l.b16 %v533
      %v546 = vunpack.c.l.b16 %v534
      %v547 = vunpack.c.l.b16 %v535
      %v548 = vpack.c.b16 %v545, %v544
      %v549 = vpack.c.b16 %v547, %v546
      %v553 = vsel %vm456, %v530, 0
      %v556 = vsel %vm456, %v531, 0
      %558 = vmatpush.bf16.msra.mxu0 0
      %559 = vmatpush.bf16.msra.mxu0 0
      %560 = vmatpush.bf16.msra.mxu0 0
      %561 = vmatpush.bf16.msra.mxu0 0
      %562 = vmatpush.bf16.msra.mxu0 0
      %563 = vmatpush.bf16.msra.mxu0 0
      %564 = vmatpush.bf16.msra.mxu0 %v549
      %565 = vmatpush.bf16.msra.mxu0 %v548
      %566 = vmatmul.bf16.gmra.mxu0 %v553
      %v567 = vpop.f32.mrf.mxu0
      %v568 = vadd.f32 %v538, %v567
      %v569 = vpop.f32.mrf.mxu0
      %v570 = vadd.f32 %v538, %v569
      %571 = vmatmul.bf16.gmra.mxu0 %v556
      %v572 = vpop.f32.mrf.mxu0
      %v573 = vadd.f32 %v538, %v572
      %v574 = vpop.f32.mrf.mxu0
      %v575 = vadd.f32 %v538, %v574
      %576 = vdwg.mxu0
      %v577 = vmax.f32 %v568, 0.0
      %v578 = vmax.f32 %v570, 0.0
      %v579 = vmax.f32 %v573, 0.0
      %v580 = vmax.f32 %v575, 0.0
      %v581 = vpack.c.bf16 %v577, %v577
      %v582 = vpack.c.bf16 %v578, %v578
      %v583 = vpack.c.bf16 %v579, %v579
      %v584 = vpack.c.bf16 %v580, %v580
      %585 = vst.msk [vmem:[%s375] sm:$0xf] %vm490, %v581
      %586 = vst.msk [vmem:[%s375 + $0x4] sm:$0xf] %vm490, %v582
      %587 = vst.msk [vmem:[%s375 + $0x8] sm:$0xf] %vm490, %v583
      %588 = vst.msk [vmem:[%s375 + $0xc] sm:$0xf] %vm490, %v584
      %s589 = smul.u32 4, %s22
      %p590 = scmp.lt.s32.totalorder %s589, 7
      %s591 = scalar_select %p590, %s589, 7
      %s592 = smul.addr %s591, 4
      %s593 = scalar_lea.vmem %s9, %s592
      %s594 = smul.u32 4, %s22
      %p595 = scmp.lt.s32.totalorder %s594, 7
      %s596 = scalar_select %p595, %s594, 7
      %s597 = smul.addr %s596, 4
      %s598 = scalar_lea.vmem %s10, %s597
      // Predicated region
      $region57: #{rnd_network_forward.1} parent=55 // pred_check
        %p599 = pneg %p234
      $region58: #{rnd_network_forward.1} parent=55 // pred_check_branch
        %601 = sbr.rel (%p599) target = $region60
      $region59: #{rnd_network_forward.1} parent=55 // pred_region
        %s602 = smul.u32 4, %s22
      $region60: #{rnd_network_forward.1} parent=55 // pred_fallthru
        _
      // Predicated region
      $region61: #{rnd_network_forward.1} parent=55 // pred_check
        %p603 = pneg %p260
      $region62: #{rnd_network_forward.1} parent=55 // pred_check_branch
        %605 = sbr.rel (%p603) target = $region64
      $region63: #{rnd_network_forward.1} parent=55 // pred_region
        %s606 = smul.u32 4, %s22
      $region64: #{rnd_network_forward.1} parent=55 // pred_fallthru
        _
    $region56: #{rnd_network_forward.1} parent=5 // pred_fallthru
      _
    %p607 = scmp.le.s32.totalorder 2, %s17
    // Predicated region
    $region65: #{rnd_network_forward.1} parent=5 // pred_check
      %p608 = pneg %p607
    $region66: #{rnd_network_forward.1} parent=5 // pred_check_branch
      %610 = sbr.rel (%p608) target = $region68
    $region67: #{rnd_network_forward.1} parent=5 // pred_region
      %s611 = ssub.s32 %s17, 2
      // Predicated region
      $region69: #{rnd_network_forward.1} parent=67 // pred_check
        %p612 = pneg %p240
      $region70: #{rnd_network_forward.1} parent=67 // pred_check_branch
        %614 = sbr.rel (%p612) target = $region72
      $region71: #{rnd_network_forward.1} parent=67 // pred_region
        %s615 = smul.u32 4, %s23
        %p616 = scmp.lt.s32.totalorder %s615, 7
        %s617 = scalar_select %p616, %s615, 7
        %s618 = smul.addr %s617, 4
        %s619 = scalar_lea.vmem %s9, %s618
      $region72: #{rnd_network_forward.1} parent=67 // pred_fallthru
        _
      // Predicated region
      $region73: #{rnd_network_forward.1} parent=67 // pred_check
        %p620 = pneg %p266
      $region74: #{rnd_network_forward.1} parent=67 // pred_check_branch
        %622 = sbr.rel (%p620) target = $region76
      $region75: #{rnd_network_forward.1} parent=67 // pred_region
        %s623 = smul.u32 4, %s23
        %p624 = scmp.lt.s32.totalorder %s623, 7
        %s625 = scalar_select %p624, %s623, 7
        %s626 = smul.addr %s625, 4
        %s627 = scalar_lea.vmem %s10, %s626
      $region76: #{rnd_network_forward.1} parent=67 // pred_fallthru
        _
    $region68: #{rnd_network_forward.1} parent=5 // pred_fallthru
      _
  $region6: #{rnd_network_forward.1} parent=0 // loop_footer
    %s21 = sadd.s32 1, %s17
  $region7: #{rnd_network_forward.1} parent=0 // loop_footer_branch
    %16 = sbr.rel target = $region3
  $region8: #{rnd_network_forward.1} parent=0 // loop_exit
    _

</llo_original>
